<compile_context>
chip_gen: v6e
topology: v6e:2x2x1
jax: 0.10.0
libtpu: 0.0.40
codegen_flags: <defaults>
</compile_context>

<pallas_src>
import math

import jax
import jax.numpy as jnp
from jax.experimental import pallas as pl
from jax.experimental.pallas import tpu as pltpu


OUT_PAD = 128          # lane-dense output width (do not shrink below 128)
SUBLANE = 8            # batch-tile granularity for f32 feature blocks
MAX_TILE_B = 2048      # cap on the per-step batch tile (roofline-saturating)
VMEM_HEADROOM = 16 * 1024 * 1024


def _round_down(x, m):
    return (x // m) * m


def _vmem_capacity_bytes():
    """Generation-aware VMEM capacity (64 MiB v7x, 128 MiB v5e/v6e)."""
    try:
        return int(pltpu.get_tpu_info().vmem_capacity_bytes)
    except Exception:
        return 64 * 1024 * 1024  # conservative (v7x) fallback


def _fused_heads_kernel(feat_ref, w_ref, b_ref, out_ref):
    """[TILE_B, F] (f32, cast in-kernel) @ [F, OUT_PAD] (bf16) + [1, OUT_PAD] (f32)."""
    feat = feat_ref[...].astype(w_ref.dtype)                   # in-kernel cast: no extra HBM pass
    acc = jnp.dot(feat, w_ref[...],
                  preferred_element_type=jnp.float32)          # MXU bf16, f32 accumulate
    out_ref[...] = (acc + b_ref[...]).astype(out_ref.dtype)    # bias add in f32


def hairstyle_heads(feature_vec, params, attrib_eval_list=(True, True, True),
                    compute_dtype=jnp.bfloat16, out_dtype=jnp.float32):
    """Pallas implementation of HairStyleClassifier.forward after the backbone.

    feature_vec: [B, F] float32 (output of self.model(input) after PassThrough fc)
    params: dict with w3/b3, w5/b5, w4/b4 (weights [F, out], biases [1, out])
    Returns the list of enabled head outputs, same order/semantics as the PyTorch loop.
    """
    B, F = feature_vec.shape

    head_defs = [("w3", "b3", 3), ("w5", "b5", 5), ("w4", "b4", 4)]
    enabled = [hd for hd, on in zip(head_defs, attrib_eval_list) if on]
    if not enabled:
        return []

    # --- fuse enabled heads into one lane-padded weight / bias ----------------
    # Padded lanes stay exactly zero because BOTH W and b are zero-padded.
    w_fused = jnp.concatenate([params[w] for w, _, _ in enabled], axis=1)
    b_fused = jnp.concatenate([params[b] for _, b, _ in enabled], axis=1)
    total_out = int(w_fused.shape[1])
    w_fused = jnp.pad(w_fused, ((0, 0), (0, OUT_PAD - total_out))).astype(compute_dtype)
    b_fused = jnp.pad(b_fused, ((0, 0), (0, OUT_PAD - total_out))).astype(jnp.float32)

    # --- generation-aware batch tile (no explicit pad; ragged last block) -----
    feat_itemsize = jnp.dtype(feature_vec.dtype).itemsize
    w_itemsize = jnp.dtype(compute_dtype).itemsize
    out_itemsize = jnp.dtype(out_dtype).itemsize

    vmem_cap = _vmem_capacity_bytes()
    budget = max(vmem_cap - VMEM_HEADROOM, 16 * 1024 * 1024)
    resident_bytes = F * OUT_PAD * w_itemsize + OUT_PAD * 4        # single-buffered W + b
    per_row_bytes = 2 * F * feat_itemsize + 2 * OUT_PAD * out_itemsize  # double-buffered feat/out
    tile_cap = max((budget - resident_bytes) // per_row_bytes, SUBLANE)
    tile_cap = max(_round_down(tile_cap, SUBLANE), SUBLANE)
    tile_b = int(min(MAX_TILE_B, tile_cap))
    if B <= tile_b:
        tile_b = B  # single full-dim block (also satisfies the (8,128) rule for tiny B)

    grid = (pl.cdiv(B, tile_b),)

    cost = pl.CostEstimate(
        flops=2 * B * F * OUT_PAD,
        transcendentals=0,
        bytes_accessed=(B * F * feat_itemsize          # single feature pass (f32)
                        + F * OUT_PAD * w_itemsize     # resident fused weight
                        + OUT_PAD * 4                  # bias
                        + B * OUT_PAD * out_itemsize)) # output

    fused_out = pl.pallas_call(
        _fused_heads_kernel,
        out_shape=jax.ShapeDtypeStruct((B, OUT_PAD), out_dtype),
        grid=grid,
        in_specs=[
            # Stream f32 feature tiles; ragged last block is masked by Pallas and
            # any garbage rows are discarded by the [:B] wrapper slice below.
            pl.BlockSpec((tile_b, F), lambda i: (i, 0)),
            # Tiny weight/bias stay VMEM-resident; constant index_map -> single buffer.
            pl.BlockSpec((F, OUT_PAD), lambda i: (0, 0), pipeline_mode=pl.Buffered(1)),
            pl.BlockSpec((1, OUT_PAD), lambda i: (0, 0), pipeline_mode=pl.Buffered(1)),
        ],
        out_specs=pl.BlockSpec((tile_b, OUT_PAD), lambda i: (i, 0)),
        compiler_params=pltpu.CompilerParams(
            dimension_semantics=("parallel",),   # batch axis shardable across TCs
            vmem_limit_bytes=int(budget),        # ~48 MiB on v7x, ~112 MiB on v5e/v6e
        ),
        cost_estimate=cost,
    )(feature_vec, w_fused, b_fused)

    # --- slice back to the logical per-head outputs ---------------------------
    out = fused_out[:B, :total_out]
    result, off = [], 0
    for _, _, n in enabled:
        result.append(out[:, off:off + n])
        off += n
    return result


def init_params(key, feature_size):
    """Deterministic init matching nn.Linear default: U(-1/sqrt(F), 1/sqrt(F))."""
    bound = 1.0 / math.sqrt(feature_size)
    ks = jax.random.split(key, 6)

    def u(k, shape):
        return jax.random.uniform(k, shape, jnp.float32, minval=-bound, maxval=bound)

    return {
        "w3": u(ks[0], (feature_size, 3)), "b3": u(ks[1], (1, 3)),
        "w5": u(ks[2], (feature_size, 5)), "b5": u(ks[3], (1, 5)),
        "w4": u(ks[4], (feature_size, 4)), "b4": u(ks[5], (1, 4)),
    }


if __name__ == "__main__":
    key = jax.random.PRNGKey(0)
    k_feat, k_params = jax.random.split(key)

    B = 2
    feature_size = 32  # small stand-in for inception_v3's 2048-dim feature

    # Stand-in for `self.model(input)` (backbone output after PassThrough fc).
    feature_vec = jax.random.normal(k_feat, (B, feature_size), jnp.float32)
    params = init_params(k_params, feature_size)

    outs = hairstyle_heads(feature_vec, params)
    outs = jax.block_until_ready(outs)

    # Reference with the same bf16 operand cast, f32 accumulate (matches kernel math).
    fb = feature_vec.astype(jnp.bfloat16).astype(jnp.float32)

    def ref_head(wk, bk):
        wb = params[wk].astype(jnp.bfloat16).astype(jnp.float32)
        return fb @ wb + params[bk]

    ref3, ref5, ref4 = ref_head("w3", "b3"), ref_head("w5", "b5"), ref_head("w4", "b4")

    assert len(outs) == 3
    assert outs[0].shape == (B, 3) and outs[1].shape == (B, 5) and outs[2].shape == (B, 4)
    assert jnp.allclose(outs[0], ref3, atol=1e-4, rtol=1e-4)
    assert jnp.allclose(outs[1], ref5, atol=1e-4, rtol=1e-4)
    assert jnp.allclose(outs[2], ref4, atol=1e-4, rtol=1e-4)

    # attrib_eval_list gating: disabled head is skipped entirely (no wasted compute).
    outs_gated = hairstyle_heads(feature_vec, params, attrib_eval_list=(True, False, True))
    outs_gated = jax.block_until_ready(outs_gated)
    assert len(outs_gated) == 2
    assert jnp.allclose(outs_gated[0], ref3, atol=1e-4, rtol=1e-4)
    assert jnp.allclose(outs_gated[1], ref4, atol=1e-4, rtol=1e-4)

    print("KERNEL_OK")
</pallas_src>

<mosaic_0001>
module attributes {stable_mosaic.version = 11 : i64} {
  func.func @_fused_heads_kernel(%arg0: i32, %arg1: memref<2x32xf32, #tpu.memory_space<vmem>>, %arg2: memref<32x128xbf16, #tpu.memory_space<vmem>>, %arg3: memref<1x128xf32, #tpu.memory_space<vmem>>, %arg4: memref<2x128xf32, #tpu.memory_space<vmem>>) attributes {dimension_semantics = [#tpu.dimension_semantics<parallel>], iteration_bounds = array<i64: 1>, scalar_prefetch = 0 : i64, scratch_operands = 0 : i64, tpu.core_type = #tpu.core_type<tc>, window_params = [{transform_indices = @transform_0, window_bounds = array<i64: 2, 32>}, {pipeline_mode = #tpu.pipeline_mode<synchronous>, transform_indices = @transform_1, window_bounds = array<i64: 32, 128>}, {pipeline_mode = #tpu.pipeline_mode<synchronous>, transform_indices = @transform_2, window_bounds = array<i64: 1, 128>}, {transform_indices = @transform_3, window_bounds = array<i64: 2, 128>}]} {
    %c0 = arith.constant 0 : index
    %c0_0 = arith.constant 0 : index
    %0 = vector.load %arg1[%c0, %c0_0] : memref<2x32xf32, #tpu.memory_space<vmem>>, vector<2x32xf32>
    %1 = arith.truncf %0 : vector<2x32xf32> to vector<2x32xbf16>
    %c0_1 = arith.constant 0 : index
    %c0_2 = arith.constant 0 : index
    %2 = vector.load %arg2[%c0_1, %c0_2] : memref<32x128xbf16, #tpu.memory_space<vmem>>, vector<32x128xbf16>
    %cst = arith.constant dense<0.000000e+00> : vector<2x128xf32>
    %3 = tpu.matmul %1, %2, %cst {dimension_numbers = #tpu.dot_dimension_numbers<[1], [0], [0], [1], [0, 0, 1, 1], [], []>} : vector<2x32xbf16>, vector<32x128xbf16>, vector<2x128xf32> -> vector<2x128xf32>
    %c0_3 = arith.constant 0 : index
    %c0_4 = arith.constant 0 : index
    %4 = vector.load %arg3[%c0_3, %c0_4] : memref<1x128xf32, #tpu.memory_space<vmem>>, vector<1x128xf32>
    %5 = vector.broadcast %4 : vector<1x128xf32> to vector<2x128xf32>
    %6 = arith.addf %3, %5 : vector<2x128xf32>
    %c0_5 = arith.constant 0 : index
    %c0_6 = arith.constant 0 : index
    %7 = vector.load %arg4[%c0_5, %c0_6] : memref<2x128xf32, #tpu.memory_space<vmem>>, vector<2x128xf32>
    tpu.vector_store %arg4[%c0_5, %c0_6], %6 {strides = array<i32>} : memref<2x128xf32, #tpu.memory_space<vmem>>, vector<2x128xf32>,
    return
  }
  func.func @transform_0(%arg0: i32) -> (i32, i32) {
    %c0_i32 = arith.constant 0 : i32
    %c0_i32_0 = arith.constant 0 : i32
    return %arg0, %c0_i32 : i32, i32
  }
  func.func @transform_1(%arg0: i32) -> (i32, i32) {
    %c0_i32 = arith.constant 0 : i32
    %c0_i32_0 = arith.constant 0 : i32
    %c0_i32_1 = arith.constant 0 : i32
    return %c0_i32, %c0_i32_0 : i32, i32
  }
  func.func @transform_2(%arg0: i32) -> (i32, i32) {
    %c0_i32 = arith.constant 0 : i32
    %c0_i32_0 = arith.constant 0 : i32
    %c0_i32_1 = arith.constant 0 : i32
    return %c0_i32, %c0_i32_0 : i32, i32
  }
  func.func @transform_3(%arg0: i32) -> (i32, i32) {
    %c0_i32 = arith.constant 0 : i32
    %c0_i32_0 = arith.constant 0 : i32
    return %arg0, %c0_i32 : i32, i32
  }
}

</mosaic_0001>

<llo_original>
// kernel: tpu_custom_call.1
$region0: #{tpu_custom_call.1}
  #allocation0 [shape = 'u32[]', space=smem, size = 0x4, offset = 0x4, fixed_abs, tag = 'smem constant byte address 0x4 - core index']
  #allocation1 [shape = 'u32[144,128]{1,0:T(1,128)}', space=vmem, size = 0x12000, scoped, tag = 'internal scratch']
  %s0 = inlined_call_operand.hbm [shape: f32[2,32], index: 0, kind: input, shape index: {}]
  %s1 = inlined_call_operand.hbm [shape: bf16[32,128], index: 1, kind: input, shape index: {}]
  %s2 = inlined_call_operand.vmem [shape: f32[1,128], index: 2, kind: input, shape index: {}]
  %s3 = inlined_call_operand.hbm [shape: f32[2,128], index: 3, kind: output, shape index: {}]
  %s4 = sld [smem:[#allocation0]]
  $region30: #{tpu_custom_call.1} parent=0
    _
  %s6 = ssub.s32 1, %s4
  %s7 = scalar_select 0, %s6, %s4
  $region1: #{tpu_custom_call.1} parent=0
    #allocation2 [shape = 'u8[1024]{0}', space=vmem, size = 0x400, scoped, tag = 'input window, operand 0, single buffered']
    #allocation3 [shape = 's32[1]{0}', space=sflag, size = 0x4, scoped, tag = 'scoped memory for tpu_custom_call.1']
    #allocation4 [shape = 's32[1]{0}', space=sflag, size = 0x4, scoped, tag = 'scoped memory for tpu_custom_call.1']
    #allocation5 [shape = 'u8[8192]{0}', space=vmem, size = 0x2000, scoped, tag = 'input window, operand 1, single buffered']
    #allocation6 [shape = 's32[1]{0}', space=sflag, size = 0x4, scoped, tag = 'scoped memory for tpu_custom_call.1']
    #allocation7 [shape = 'u8[1024]{0}', space=vmem, size = 0x400, scoped, tag = 'output window, operand 0, single buffered']
    %8 = vsyncpa [#allocation3], 0
    %9 = vsyncpa [#allocation6], 0
    %10 = vsyncpa [#allocation4], 0
    // Predicated region
    $region2: #{tpu_custom_call.1} parent=1 // pred_check
      _
    $region3: #{tpu_custom_call.1} parent=1 // pred_check_branch
      %12 = sbr.rel (0) target = $region5
    $region4: #{tpu_custom_call.1} parent=1 // pred_region
      %s14 = ssub.s32 32, 32
      %15 = vsyncadd [#allocation3], %s14
      %s17 = sshll.u32 [#allocation2], 4
      %s18 = int_to_ptr.vmem [resolvable:$true] %s17
      %20 = dma.hbm_to_vmem [thread:$0]  %s0, 32, %s18, [#allocation3]
    $region5: #{tpu_custom_call.1} parent=1 // pred_fallthru
      _
    // Predicated region
    $region6: #{tpu_custom_call.1} parent=1 // pred_check
      _
    $region7: #{tpu_custom_call.1} parent=1 // pred_check_branch
      %22 = sbr.rel (0) target = $region9
    $region8: #{tpu_custom_call.1} parent=1 // pred_region
      %s24 = ssub.s32 256, 256
      %25 = vsyncadd [#allocation6], %s24
      %s26 = sshll.u32 [#allocation5], 4
      %s27 = int_to_ptr.vmem [resolvable:$true] %s26
      %32 = dma.hbm_to_vmem [thread:$0]  %s1, 256, %s27, [#allocation6], 64, 64, 4
    $region9: #{tpu_custom_call.1} parent=1 // pred_fallthru
      _
    // Predicated region
    $region10: #{tpu_custom_call.1} parent=1 // pred_check
      _
    $region11: #{tpu_custom_call.1} parent=1 // pred_check_branch
      %34 = sbr.rel (0) target = $region13
    $region12: #{tpu_custom_call.1} parent=1 // pred_region
      _
    $region13: #{tpu_custom_call.1} parent=1 // pred_fallthru
      _
    // Predicated region
    $region14: #{tpu_custom_call.1} parent=1 // pred_check
      _
    $region15: #{tpu_custom_call.1} parent=1 // pred_check_branch
      %36 = sbr.rel (0) target = $region17
    $region16: #{tpu_custom_call.1} parent=1 // pred_region
      %37 = dma.done [#allocation3], 32
    $region17: #{tpu_custom_call.1} parent=1 // pred_fallthru
      _
    // Predicated region
    $region18: #{tpu_custom_call.1} parent=1 // pred_check
      _
    $region19: #{tpu_custom_call.1} parent=1 // pred_check_branch
      %39 = sbr.rel (0) target = $region21
    $region20: #{tpu_custom_call.1} parent=1 // pred_region
      %40 = dma.done [#allocation6], 256
    $region21: #{tpu_custom_call.1} parent=1 // pred_fallthru
      _
    %v42 = vld [vmem:[#allocation2] sm:$0x3]
    %v43 = vpack.c.bf16 %v42, %v42
    %v44 = vld [vmem:[#allocation5] sm:$0xf]
    %v45 = vld [vmem:[#allocation5 + $0x4] sm:$0xf]
    %v46 = vld [vmem:[#allocation5 + $0x8] sm:$0xf]
    %v47 = vld [vmem:[#allocation5 + $0xc] sm:$0xf]
    %v48 = vld [vmem:[%s2] sm:$0x1]
    %v50 = vlaneseq
    %v51 = vshrl.u32 %v50, 7
    %v52 = vsub.s32 0, %v51
    %v53 = vrot.slane %v48, %v52
    %v59 = vunpack.c.l.b16 %v44
    %v60 = vunpack.c.l.b16 %v45
    %v61 = vunpack.c.l.b16 %v46
    %v62 = vunpack.c.l.b16 %v47
    %v63 = vpack.c.b16 %v60, %v59
    %v64 = vpack.c.b16 %v62, %v61
    %vm67 = vcmask 261120
    %v69 = vsel %vm67, %v43, 0
    %71 = vmatprep.subr.bf16.mxu0 0
    %72 = vmatpush1.bf16.msra.mxu0 0
    %73 = vmatprep.subr.bf16.mxu0 0
    %74 = vmatpush1.bf16.msra.mxu0 0
    %75 = vmatprep.subr.bf16.mxu0 0
    %76 = vmatpush1.bf16.msra.mxu0 0
    %77 = vmatprep.subr.bf16.mxu0 0
    %78 = vmatpush1.bf16.msra.mxu0 0
    %79 = vmatprep.subr.bf16.mxu0 0
    %80 = vmatpush1.bf16.msra.mxu0 0
    %81 = vmatprep.subr.bf16.mxu0 0
    %82 = vmatpush1.bf16.msra.mxu0 0
    %83 = vmatprep.subr.bf16.mxu0 0
    %84 = vmatpush1.bf16.msra.mxu0 %v64
    %85 = vmatprep.subr.bf16.mxu0 0
    %86 = vmatpush1.bf16.msra.mxu0 %v63
    %87 = vmatprep.subr.bf16.mxu0 0
    %88 = vmatpush2.bf16.msra.mxu0 0
    %89 = vmatprep.subr.bf16.mxu0 0
    %90 = vmatpush2.bf16.msra.mxu0 0
    %91 = vmatprep.subr.bf16.mxu0 0
    %92 = vmatpush2.bf16.msra.mxu0 0
    %93 = vmatprep.subr.bf16.mxu0 0
    %94 = vmatpush2.bf16.msra.mxu0 0
    %95 = vmatprep.subr.bf16.mxu0 0
    %96 = vmatpush2.bf16.msra.mxu0 0
    %97 = vmatprep.subr.bf16.mxu0 0
    %98 = vmatpush2.bf16.msra.mxu0 0
    %99 = vmatprep.subr.bf16.mxu0 0
    %100 = vmatpush2.bf16.msra.mxu0 0
    %101 = vmatprep.subr.bf16.mxu0 0
    %102 = vmatpush2.bf16.msra.mxu0 0
    %103 = vmatprep.mubr.bf16.mxu0 0
    %104 = vmatmul.mubr.bf16.gmra.mxu0 %v69
    %v105 = vpop.f32.mrf.mxu0
    %v106 = vadd.f32 %v53, %v105
    %v107 = vpop.f32.mrf.mxu0
    %v108 = vpop.f32.mrf.mxu0
    %v109 = vpop.f32.mrf.mxu0
    %110 = vdwg.mxu0
    %111 = vst [vmem:[#allocation7] sm:$0x3] %v106
    // Predicated region
    $region22: #{tpu_custom_call.1} parent=1 // pred_check
      _
    $region23: #{tpu_custom_call.1} parent=1 // pred_check_branch
      %113 = sbr.rel (0) target = $region25
    $region24: #{tpu_custom_call.1} parent=1 // pred_region
      %s115 = ssub.s32 32, 32
      %116 = vsyncadd [#allocation4], %s115
      %s118 = sshll.u32 [#allocation7], 4
      %s119 = int_to_ptr.vmem [resolvable:$true] %s118
      %121 = dma.vmem_to_hbm [thread:$0]  %s119, 32, %s3, [#allocation4]
    $region25: #{tpu_custom_call.1} parent=1 // pred_fallthru
      _
    // Predicated region
    $region26: #{tpu_custom_call.1} parent=1 // pred_check
      _
    $region27: #{tpu_custom_call.1} parent=1 // pred_check_branch
      %123 = sbr.rel (0) target = $region29
    $region28: #{tpu_custom_call.1} parent=1 // pred_region
      %124 = dma.done [#allocation4], 32
    $region29: #{tpu_custom_call.1} parent=1 // pred_fallthru
      _
    %125 = vsyncpa [#allocation3], 1
    %126 = vsyncpa [#allocation6], 1
    %127 = vsyncpa [#allocation4], 1

</llo_original>
